<compile_context>
chip_gen: v7x
topology: tpu7x:2x2x1
jax: 0.10.0
libtpu: 0.0.40
codegen_flags: <defaults>
</compile_context>

<pallas_src>
import numpy as np
import jax
import jax.numpy as jnp
from jax import lax
from jax.experimental import pallas as pl
from jax.experimental.pallas import tpu as pltpu

# ---- 12-term "index" hyperdeterminant constants (reference / docs only) ----
_HD_COEFF = (1.0, 1.0, 1.0, 1.0, -2.0, -2.0, -2.0, -2.0, -2.0, -2.0, 4.0, 4.0)
_HD_IDX = (
    (0, 0, 7, 7), (1, 1, 6, 6), (2, 2, 5, 5), (4, 4, 3, 3),
    (0, 7, 3, 4), (0, 7, 5, 2), (0, 7, 6, 1), (3, 4, 5, 2),
    (3, 4, 6, 1), (5, 2, 6, 1), (0, 6, 5, 3), (7, 1, 2, 4),
)

# eps0 = tiny**(1/2), eps1 = eps0**(1/3)  (module uses float64 finfo; adapted to float32)
_EPS0 = float(np.sqrt(np.finfo(np.float32).tiny))
_EPS1 = float(np.sqrt(np.finfo(np.float32).tiny) ** (1.0 / 3.0))

# Amplitude-index selections routed through the matmul; each yields a 16-row re/im block.
#   identity, reversed (Cayley pairings d07,d16,d25,d34 each twice), and B/G/D such that
#   psi_k * psi_B(k) * psi_G(k) * psi_D(k) equals psi0psi3psi5psi6 (4 rows) or
#   psi1psi2psi4psi7 (4 rows).
_SEL_ID = (0, 1, 2, 3, 4, 5, 6, 7)
_SEL_REV = (7, 6, 5, 4, 3, 2, 1, 0)
_SEL_B = (3, 2, 1, 0, 1, 0, 3, 2)
_SEL_G = (5, 4, 4, 5, 2, 3, 0, 1)
_SEL_D = (6, 7, 7, 6, 7, 6, 5, 4)
_SELS = (_SEL_ID, _SEL_REV, _SEL_B, _SEL_G, _SEL_D)


def _three_tangle_kernel(n_valid_ref, la_ref, lb_ref, mre_ref, mim_ref, out_ref):
    c = pl.program_id(0)                      # core / partial-sum row
    i = pl.program_id(1)                      # column-tile step (reduction axis)
    per_core = pl.num_programs(1)
    tn = mre_ref.shape[1]                     # lane-dense column tile width (static)

    @pl.when(i == 0)
    def _():
        out_ref[...] = jnp.zeros_like(out_ref)

    # One fused complex-as-real matmul pair on the MXU emits all 5 selected psi copies:
    # psi (80, tn): rows [0:16)=identity, [16:32)=reversed, [32:48)=B, [48:64)=G, [64:80)=D,
    # each block laid out as 8 re-rows followed by 8 im-rows (sublane aligned slices).
    psi = (jnp.dot(la_ref[...], mre_ref[...], preferred_element_type=jnp.float32)
           + jnp.dot(lb_ref[...], mim_ref[...], preferred_element_type=jnp.float32))

    def block(s):
        base = 16 * s
        return psi[base:base + 8, :], psi[base + 8:base + 16, :]

    id_re, id_im = block(0)
    rv_re, rv_im = block(1)
    b_re, b_im = block(2)
    g_re, g_im = block(3)
    d_re, d_im = block(4)

    # --- sublane-dense (8, tn) elementwise stage (full VPU density) ---
    # A_k = psi_k * psi_{7-k}
    a_re = id_re * rv_re - id_im * rv_im
    a_im = id_re * rv_im + id_im * rv_re
    # A_k^2
    a2_re = a_re * a_re - a_im * a_im
    a2_im = 2.0 * (a_re * a_im)
    # quartic rows: T_k = psi_k * psi_B(k) * psi_G(k) * psi_D(k)
    p_re = id_re * b_re - id_im * b_im
    p_im = id_re * b_im + id_im * b_re
    q_re = g_re * d_re - g_im * d_im
    q_im = g_re * d_im + g_im * d_re
    t_re = p_re * q_re - p_im * q_im
    t_im = p_re * q_im + p_im * q_re

    # --- XLU sublane reductions to (1, tn) ---
    sa_re = jnp.sum(a_re, axis=0, keepdims=True)        # 2 * sum_k d_k
    sa_im = jnp.sum(a_im, axis=0, keepdims=True)
    sq_re = jnp.sum(a2_re, axis=0, keepdims=True)        # 2 * sum_k d_k^2
    sq_im = jnp.sum(a2_im, axis=0, keepdims=True)
    st_re = jnp.sum(t_re, axis=0, keepdims=True)         # 4 * (t1 + t2)
    st_im = jnp.sum(t_im, axis=0, keepdims=True)

    psi_id = psi[0:16, :]
    norm2 = jnp.sum(psi_id * psi_id, axis=0, keepdims=True)   # |psi|^2 per column

    # Det = 2*sum d^2 - (sum d)^2 + 4*(t1+t2) = SQ - 0.25*SA^2 + ST  (complex)
    det_re = sq_re - 0.25 * (sa_re * sa_re - sa_im * sa_im) + st_re
    det_im = sq_im - 0.5 * (sa_re * sa_im) + st_im

    abs_det2 = det_re * det_re + det_im * det_im
    tau = 4.0 * jnp.sqrt(jnp.maximum(abs_det2, _EPS0))
    denom = jnp.maximum(norm2, _EPS1)
    contrib = (tau / denom).reshape(1, 1, tn)             # exact divide (feeds optimizer)

    blk_start = (c * per_core + i) * tn
    nv = n_valid_ref[0]

    @pl.when(blk_start + tn <= nv)             # interior tile: no masking work
    def _():
        out_ref[...] += contrib

    @pl.when(blk_start + tn > nv)              # edge / overflow tile: mask padded columns
    def _():
        col = lax.broadcasted_iota(jnp.int32, (1, 1, tn), 2) + blk_start
        out_ref[...] += jnp.where(col < nv, contrib, 0.0)


def three_tangle_forward(mat_re, mat_im, rho_re, rho_im, *, tile_n=512, num_cores=2):
    """3-tangle objective (ThreeTangleModel.forward).

    mat_*: (num_term, rank) float32 split re/im of the Stiefel point,
    rho_*: (rank, 8) float32 split re/im of sqrt_rho_Tconj. Returns scalar float32.
    """
    assert tile_n % 128 == 0 and num_cores >= 1
    n, r = mat_re.shape
    assert mat_im.shape == (n, r)
    assert rho_re.shape == (r, 8) and rho_im.shape == (r, 8)
    f32 = jnp.float32

    rt_re = jnp.asarray(rho_re, f32).T                    # (8, r) amplitude generators
    rt_im = jnp.asarray(rho_im, f32).T
    mt_re = jnp.asarray(mat_re, f32).T                    # (r, n) streamed operands
    mt_im = jnp.asarray(mat_im, f32).T

    # Pack the five row-selections into two small resident matmul operands such that
    #   psi_block = LA @ mt_re + LB @ mt_im    (complex-as-real, all selections at once)
    la_blocks, lb_blocks = [], []
    for sel in _SELS:
        idx = list(sel)
        gr, gi = rt_re[idx, :], rt_im[idx, :]
        la_blocks += [gr, gi]
        lb_blocks += [-gi, gr]
    la = jnp.concatenate(la_blocks, axis=0)               # (80, r)
    lb = jnp.concatenate(lb_blocks, axis=0)               # (80, r)
    nrows = la.shape[0]

    # Lane-pad the ensemble axis to a multiple of 128 only if needed (no-op for nice n);
    # ragged last tiles are handled by the in-kernel mask.
    n_lane = ((n + 127) // 128) * 128
    if n_lane != n:
        mt_re = jnp.pad(mt_re, ((0, 0), (0, n_lane - n)))
        mt_im = jnp.pad(mt_im, ((0, 0), (0, n_lane - n)))

    tile = min(tile_n, n_lane)
    num_tiles = int(pl.cdiv(n_lane, tile))
    per_core = int(pl.cdiv(num_tiles, num_cores))
    n_valid = jnp.asarray([n], dtype=jnp.int32)

    def m_index(c, i, nv):
        # clamp so no block is fully out of bounds; duplicated tiles are fully masked
        return (0, jnp.minimum(c * per_core + i, num_tiles - 1))

    out = pl.pallas_call(
        _three_tangle_kernel,
        out_shape=jax.ShapeDtypeStruct((num_cores, 1, tile), jnp.float32),
        grid_spec=pltpu.PrefetchScalarGridSpec(
            num_scalar_prefetch=1,
            grid=(num_cores, per_core),
            in_specs=[
                pl.BlockSpec((nrows, r), lambda c, i, nv: (0, 0)),   # LA: resident
                pl.BlockSpec((nrows, r), lambda c, i, nv: (0, 0)),   # LB: resident
                pl.BlockSpec((r, tile), m_index),                    # mat_re^T tile
                pl.BlockSpec((r, tile), m_index),                    # mat_im^T tile
            ],
            out_specs=pl.BlockSpec((1, 1, tile), lambda c, i, nv: (c, 0, 0)),
        ),
        compiler_params=pltpu.CompilerParams(
            dimension_semantics=("parallel", "arbitrary")),
    )(n_valid, la, lb, mt_re, mt_im)
    return jnp.sum(out)    # tiny host-side reduce over cores and lanes


# ---------------- host-side glue (parameter setup, identical math to the module) ----------------
def _stiefel_polar_np(theta):
    # numqi.manifold.Stiefel(..., method='polar'):  mat = theta @ (theta^H theta)^{-1/2}
    # TODO(synk): 8x8 complex eigendecomposition has no Pallas equivalent; NumPy glue.
    h = theta.conj().T @ theta
    w, v = np.linalg.eigh(h)
    return theta @ ((v / np.sqrt(w)) @ v.conj().T)


def _sqrt_rho_Tconj_np(rho, rank):
    # ThreeTangleModel.set_density_matrix
    evl, evc = np.linalg.eigh(rho)
    evl = np.maximum(0, evl[-rank:])
    evc = evc[:, -rank:]
    return np.ascontiguousarray((evc * np.sqrt(evl)).T.conj())      # (rank, 8)


def _reference_forward_np(mat_st, sqrt_rho_Tconj):
    # float64 NumPy reference mirroring the torch forward (12-term index hyperdeterminant)
    psi = mat_st @ sqrt_rho_Tconj
    det = np.zeros(psi.shape[0], dtype=np.complex128)
    for cf, (i0, i1, i2, i3) in zip(_HD_COEFF, _HD_IDX):
        det = det + cf * psi[:, i0] * psi[:, i1] * psi[:, i2] * psi[:, i3]
    tmp1 = det.real ** 2 + det.imag ** 2
    eps0 = np.finfo(np.float64).tiny ** 0.5
    eps1 = eps0 ** (1.0 / 3.0)
    tau = 4.0 * np.sqrt(np.maximum(tmp1, eps0))
    tmp2 = np.maximum((psi.real ** 2 + psi.imag ** 2).sum(axis=1), eps1)
    return float((tau / tmp2).sum())


if __name__ == "__main__":
    rank = 8
    key = jax.random.PRNGKey(0)
    ka, kb, kc = jax.random.split(key, 3)

    # random full-rank density matrix rho (8x8), Hermitian PSD, trace 1
    a = (np.asarray(jax.random.normal(ka, (8, 8)), np.float64)
         + 1j * np.asarray(jax.random.normal(kb, (8, 8)), np.float64))
    rho = a @ a.conj().T
    rho = rho / np.trace(rho).real
    sqrt_rho_Tconj = _sqrt_rho_Tconj_np(rho, rank)          # (rank, 8) complex128

    # small shapes: one single-tile case and one multi-tile / ragged / 2-core case
    for num_term in (16, 700):
        kc, k1, k2 = jax.random.split(kc, 3)
        theta = (np.asarray(jax.random.normal(k1, (num_term, rank)), np.float64)
                 + 1j * np.asarray(jax.random.normal(k2, (num_term, rank)), np.float64))
        mat_st = _stiefel_polar_np(theta)                   # (num_term, rank) complex128

        ret = three_tangle_forward(
            jnp.asarray(mat_st.real, jnp.float32), jnp.asarray(mat_st.imag, jnp.float32),
            jnp.asarray(sqrt_rho_Tconj.real, jnp.float32),
            jnp.asarray(sqrt_rho_Tconj.imag, jnp.float32))
        ret = float(jax.block_until_ready(ret))

        ref = _reference_forward_np(mat_st, sqrt_rho_Tconj)
        np.testing.assert_allclose(ret, ref, rtol=0.1, atol=1e-3)

    print("KERNEL_OK")
</pallas_src>

<mosaic_0001>
module attributes {stable_mosaic.version = 11 : i64} {
  func.func @_three_tangle_kernel(%arg0: i32, %arg1: i32, %arg2: memref<1xi32, #tpu.memory_space<smem>>, %arg3: memref<80x8xf32, #tpu.memory_space<vmem>>, %arg4: memref<80x8xf32, #tpu.memory_space<vmem>>, %arg5: memref<8x128xf32, #tpu.memory_space<vmem>>, %arg6: memref<8x128xf32, #tpu.memory_space<vmem>>, %arg7: memref<1x1x128xf32, #tpu.memory_space<vmem>>) attributes {dimension_semantics = [#tpu.dimension_semantics<parallel>, #tpu.dimension_semantics<arbitrary>], iteration_bounds = array<i64: 2, 1>, scalar_prefetch = 1 : i64, scratch_operands = 0 : i64, tpu.core_type = #tpu.core_type<tc>, window_params = [{pipeline_mode = #tpu.pipeline_mode<synchronous>, transform_indices = @transform_0, window_bounds = array<i64: 80, 8>}, {pipeline_mode = #tpu.pipeline_mode<synchronous>, transform_indices = @transform_1, window_bounds = array<i64: 80, 8>}, {transform_indices = @transform_2, window_bounds = array<i64: 8, 128>}, {transform_indices = @transform_3, window_bounds = array<i64: 8, 128>}, {transform_indices = @transform_4, window_bounds = array<i64: 1, 1, 128>}]} {
    %c0_i32 = arith.constant 0 : i32
    %0 = arith.cmpi eq, %arg1, %c0_i32 : i32
    %1 = arith.extui %0 : i1 to i32
    %c0_i32_0 = arith.constant 0 : i32
    %2 = arith.cmpi ne, %1, %c0_i32_0 : i32
    scf.if %2 {
      %cst_27 = arith.constant 0.000000e+00 : f32
      %102 = vector.broadcast %cst_27 : f32 to vector<1x1x128xf32>
      %c0_28 = arith.constant 0 : index
      %c0_29 = arith.constant 0 : index
      %c0_30 = arith.constant 0 : index
      %103 = vector.load %arg7[%c0_28, %c0_29, %c0_30] : memref<1x1x128xf32, #tpu.memory_space<vmem>>, vector<1x1x128xf32>
      tpu.vector_store %arg7[%c0_28, %c0_29, %c0_30], %102 {strides = array<i32>} : memref<1x1x128xf32, #tpu.memory_space<vmem>>, vector<1x1x128xf32>,
    } else {
    }
    %c0 = arith.constant 0 : index
    %c0_1 = arith.constant 0 : index
    %3 = vector.load %arg3[%c0, %c0_1] : memref<80x8xf32, #tpu.memory_space<vmem>>, vector<80x8xf32>
    %c0_2 = arith.constant 0 : index
    %c0_3 = arith.constant 0 : index
    %4 = vector.load %arg5[%c0_2, %c0_3] : memref<8x128xf32, #tpu.memory_space<vmem>>, vector<8x128xf32>
    %cst = arith.constant dense<0.000000e+00> : vector<80x128xf32>
    %5 = tpu.matmul %3, %4, %cst {dimension_numbers = #tpu.dot_dimension_numbers<[1], [0], [0], [1], [0, 0, 1, 1], [], []>} : vector<80x8xf32>, vector<8x128xf32>, vector<80x128xf32> -> vector<80x128xf32>
    %c0_4 = arith.constant 0 : index
    %c0_5 = arith.constant 0 : index
    %6 = vector.load %arg4[%c0_4, %c0_5] : memref<80x8xf32, #tpu.memory_space<vmem>>, vector<80x8xf32>
    %c0_6 = arith.constant 0 : index
    %c0_7 = arith.constant 0 : index
    %7 = vector.load %arg6[%c0_6, %c0_7] : memref<8x128xf32, #tpu.memory_space<vmem>>, vector<8x128xf32>
    %cst_8 = arith.constant dense<0.000000e+00> : vector<80x128xf32>
    %8 = tpu.matmul %6, %7, %cst_8 {dimension_numbers = #tpu.dot_dimension_numbers<[1], [0], [0], [1], [0, 0, 1, 1], [], []>} : vector<80x8xf32>, vector<8x128xf32>, vector<80x128xf32> -> vector<80x128xf32>
    %9 = arith.addf %5, %8 : vector<80x128xf32>
    %10 = vector.extract_strided_slice %9 {offsets = [0, 0], sizes = [8, 128], strides = [1, 1]} : vector<80x128xf32> to vector<8x128xf32>
    %11 = vector.extract_strided_slice %9 {offsets = [8, 0], sizes = [8, 128], strides = [1, 1]} : vector<80x128xf32> to vector<8x128xf32>
    %12 = vector.extract_strided_slice %9 {offsets = [16, 0], sizes = [8, 128], strides = [1, 1]} : vector<80x128xf32> to vector<8x128xf32>
    %13 = vector.extract_strided_slice %9 {offsets = [24, 0], sizes = [8, 128], strides = [1, 1]} : vector<80x128xf32> to vector<8x128xf32>
    %14 = vector.extract_strided_slice %9 {offsets = [32, 0], sizes = [8, 128], strides = [1, 1]} : vector<80x128xf32> to vector<8x128xf32>
    %15 = vector.extract_strided_slice %9 {offsets = [40, 0], sizes = [8, 128], strides = [1, 1]} : vector<80x128xf32> to vector<8x128xf32>
    %16 = vector.extract_strided_slice %9 {offsets = [48, 0], sizes = [8, 128], strides = [1, 1]} : vector<80x128xf32> to vector<8x128xf32>
    %17 = vector.extract_strided_slice %9 {offsets = [56, 0], sizes = [8, 128], strides = [1, 1]} : vector<80x128xf32> to vector<8x128xf32>
    %18 = vector.extract_strided_slice %9 {offsets = [64, 0], sizes = [8, 128], strides = [1, 1]} : vector<80x128xf32> to vector<8x128xf32>
    %19 = vector.extract_strided_slice %9 {offsets = [72, 0], sizes = [8, 128], strides = [1, 1]} : vector<80x128xf32> to vector<8x128xf32>
    %20 = arith.mulf %10, %12 : vector<8x128xf32>
    %21 = arith.mulf %11, %13 : vector<8x128xf32>
    %22 = arith.subf %20, %21 : vector<8x128xf32>
    %23 = arith.mulf %10, %13 : vector<8x128xf32>
    %24 = arith.mulf %11, %12 : vector<8x128xf32>
    %25 = arith.addf %23, %24 : vector<8x128xf32>
    %26 = arith.mulf %22, %22 : vector<8x128xf32>
    %27 = arith.mulf %25, %25 : vector<8x128xf32>
    %28 = arith.subf %26, %27 : vector<8x128xf32>
    %29 = arith.mulf %22, %25 : vector<8x128xf32>
    %cst_9 = arith.constant 2.000000e+00 : f32
    %30 = vector.broadcast %cst_9 : f32 to vector<8x128xf32>
    %31 = arith.mulf %30, %29 : vector<8x128xf32>
    %32 = arith.mulf %10, %14 : vector<8x128xf32>
    %33 = arith.mulf %11, %15 : vector<8x128xf32>
    %34 = arith.subf %32, %33 : vector<8x128xf32>
    %35 = arith.mulf %10, %15 : vector<8x128xf32>
    %36 = arith.mulf %11, %14 : vector<8x128xf32>
    %37 = arith.addf %35, %36 : vector<8x128xf32>
    %38 = arith.mulf %16, %18 : vector<8x128xf32>
    %39 = arith.mulf %17, %19 : vector<8x128xf32>
    %40 = arith.subf %38, %39 : vector<8x128xf32>
    %41 = arith.mulf %16, %19 : vector<8x128xf32>
    %42 = arith.mulf %17, %18 : vector<8x128xf32>
    %43 = arith.addf %41, %42 : vector<8x128xf32>
    %44 = arith.mulf %34, %40 : vector<8x128xf32>
    %45 = arith.mulf %37, %43 : vector<8x128xf32>
    %46 = arith.subf %44, %45 : vector<8x128xf32>
    %47 = arith.mulf %34, %43 : vector<8x128xf32>
    %48 = arith.mulf %37, %40 : vector<8x128xf32>
    %49 = arith.addf %47, %48 : vector<8x128xf32>
    %cst_10 = arith.constant dense<0.000000e+00> : vector<128xf32>
    %50 = vector.multi_reduction <add>, %22, %cst_10 [0] : vector<8x128xf32> to vector<128xf32>
    %51 = vector.shape_cast %50 : vector<128xf32> to vector<1x128xf32>
    %cst_11 = arith.constant dense<0.000000e+00> : vector<128xf32>
    %52 = vector.multi_reduction <add>, %25, %cst_11 [0] : vector<8x128xf32> to vector<128xf32>
    %53 = vector.shape_cast %52 : vector<128xf32> to vector<1x128xf32>
    %cst_12 = arith.constant dense<0.000000e+00> : vector<128xf32>
    %54 = vector.multi_reduction <add>, %28, %cst_12 [0] : vector<8x128xf32> to vector<128xf32>
    %55 = vector.shape_cast %54 : vector<128xf32> to vector<1x128xf32>
    %cst_13 = arith.constant dense<0.000000e+00> : vector<128xf32>
    %56 = vector.multi_reduction <add>, %31, %cst_13 [0] : vector<8x128xf32> to vector<128xf32>
    %57 = vector.shape_cast %56 : vector<128xf32> to vector<1x128xf32>
    %cst_14 = arith.constant dense<0.000000e+00> : vector<128xf32>
    %58 = vector.multi_reduction <add>, %46, %cst_14 [0] : vector<8x128xf32> to vector<128xf32>
    %59 = vector.shape_cast %58 : vector<128xf32> to vector<1x128xf32>
    %cst_15 = arith.constant dense<0.000000e+00> : vector<128xf32>
    %60 = vector.multi_reduction <add>, %49, %cst_15 [0] : vector<8x128xf32> to vector<128xf32>
    %61 = vector.shape_cast %60 : vector<128xf32> to vector<1x128xf32>
    %62 = vector.extract_strided_slice %9 {offsets = [0, 0], sizes = [16, 128], strides = [1, 1]} : vector<80x128xf32> to vector<16x128xf32>
    %63 = arith.mulf %62, %62 : vector<16x128xf32>
    %cst_16 = arith.constant dense<0.000000e+00> : vector<128xf32>
    %64 = vector.multi_reduction <add>, %63, %cst_16 [0] : vector<16x128xf32> to vector<128xf32>
    %65 = vector.shape_cast %64 : vector<128xf32> to vector<1x128xf32>
    %66 = arith.mulf %51, %51 : vector<1x128xf32>
    %67 = arith.mulf %53, %53 : vector<1x128xf32>
    %68 = arith.subf %66, %67 : vector<1x128xf32>
    %cst_17 = arith.constant 2.500000e-01 : f32
    %69 = vector.broadcast %cst_17 : f32 to vector<1x128xf32>
    %70 = arith.mulf %69, %68 : vector<1x128xf32>
    %71 = arith.subf %55, %70 : vector<1x128xf32>
    %72 = arith.addf %71, %59 : vector<1x128xf32>
    %73 = arith.mulf %51, %53 : vector<1x128xf32>
    %cst_18 = arith.constant 5.000000e-01 : f32
    %74 = vector.broadcast %cst_18 : f32 to vector<1x128xf32>
    %75 = arith.mulf %74, %73 : vector<1x128xf32>
    %76 = arith.subf %57, %75 : vector<1x128xf32>
    %77 = arith.addf %76, %61 : vector<1x128xf32>
    %78 = arith.mulf %72, %72 : vector<1x128xf32>
    %79 = arith.mulf %77, %77 : vector<1x128xf32>
    %80 = arith.addf %78, %79 : vector<1x128xf32>
    %cst_19 = arith.constant 1.08420217E-19 : f32
    %81 = vector.broadcast %cst_19 : f32 to vector<1x128xf32>
    %82 = arith.maximumf %80, %81 : vector<1x128xf32>
    %83 = math.sqrt %82 : vector<1x128xf32>
    %cst_20 = arith.constant 4.000000e+00 : f32
    %84 = vector.broadcast %cst_20 : f32 to vector<1x128xf32>
    %85 = arith.mulf %84, %83 : vector<1x128xf32>
    %cst_21 = arith.constant 4.76836959E-7 : f32
    %86 = vector.broadcast %cst_21 : f32 to vector<1x128xf32>
    %87 = arith.maximumf %65, %86 : vector<1x128xf32>
    %88 = arith.divf %85, %87 : vector<1x128xf32>
    %89 = vector.shape_cast %88 : vector<1x128xf32> to vector<1x1x128xf32>
    %c1_i32 = arith.constant 1 : i32
    %90 = arith.muli %arg0, %c1_i32 : i32
    %91 = arith.addi %90, %arg1 : i32
    %c128_i32 = arith.constant 128 : i32
    %92 = arith.muli %91, %c128_i32 : i32
    %c0_22 = arith.constant 0 : index
    %93 = memref.load %arg2[%c0_22] : memref<1xi32, #tpu.memory_space<smem>>
    %c128_i32_23 = arith.constant 128 : i32
    %94 = arith.addi %92, %c128_i32_23 : i32
    %95 = arith.cmpi sle, %94, %93 : i32
    %96 = arith.extui %95 : i1 to i32
    %c0_i32_24 = arith.constant 0 : i32
    %97 = arith.cmpi ne, %96, %c0_i32_24 : i32
    scf.if %97 {
      %c0_27 = arith.constant 0 : index
      %c0_28 = arith.constant 0 : index
      %c0_29 = arith.constant 0 : index
      %102 = vector.load %arg7[%c0_27, %c0_28, %c0_29] : memref<1x1x128xf32, #tpu.memory_space<vmem>>, vector<1x1x128xf32>
      %103 = arith.addf %102, %89 : vector<1x1x128xf32>
      %c0_30 = arith.constant 0 : index
      %c0_31 = arith.constant 0 : index
      %c0_32 = arith.constant 0 : index
      %104 = vector.load %arg7[%c0_30, %c0_31, %c0_32] : memref<1x1x128xf32, #tpu.memory_space<vmem>>, vector<1x1x128xf32>
      tpu.vector_store %arg7[%c0_30, %c0_31, %c0_32], %103 {strides = array<i32>} : memref<1x1x128xf32, #tpu.memory_space<vmem>>, vector<1x1x128xf32>,
    } else {
    }
    %c128_i32_25 = arith.constant 128 : i32
    %98 = arith.addi %92, %c128_i32_25 : i32
    %99 = arith.cmpi sgt, %98, %93 : i32
    %100 = arith.extui %99 : i1 to i32
    %c0_i32_26 = arith.constant 0 : i32
    %101 = arith.cmpi ne, %100, %c0_i32_26 : i32
    scf.if %101 {
      %102 = tpu.iota {dimensions = array<i32: 2>} : vector<1x1x128xi32>
      %103 = vector.broadcast %92 : i32 to vector<1x1x128xi32>
      %104 = arith.addi %102, %103 : vector<1x1x128xi32>
      %c0_27 = arith.constant 0 : index
      %c0_28 = arith.constant 0 : index
      %c0_29 = arith.constant 0 : index
      %105 = vector.load %arg7[%c0_27, %c0_28, %c0_29] : memref<1x1x128xf32, #tpu.memory_space<vmem>>, vector<1x1x128xf32>
      %106 = vector.broadcast %93 : i32 to vector<1x1x128xi32>
      %107 = arith.cmpi slt, %104, %106 : vector<1x1x128xi32>
      %cst_30 = arith.constant 0.000000e+00 : f32
      %108 = vector.broadcast %cst_30 : f32 to vector<1x1x128xf32>
      %109 = arith.select %107, %89, %108 : vector<1x1x128xi1>, vector<1x1x128xf32>
      %110 = arith.addf %105, %109 : vector<1x1x128xf32>
      %c0_31 = arith.constant 0 : index
      %c0_32 = arith.constant 0 : index
      %c0_33 = arith.constant 0 : index
      %111 = vector.load %arg7[%c0_31, %c0_32, %c0_33] : memref<1x1x128xf32, #tpu.memory_space<vmem>>, vector<1x1x128xf32>
      tpu.vector_store %arg7[%c0_31, %c0_32, %c0_33], %110 {strides = array<i32>} : memref<1x1x128xf32, #tpu.memory_space<vmem>>, vector<1x1x128xf32>,
    } else {
    }
    return
  }
  func.func @transform_0(%arg0: i32, %arg1: i32, %arg2: memref<1xi32, #tpu.memory_space<smem>>) -> (i32, i32) {
    %c0_i32 = arith.constant 0 : i32
    %c0_i32_0 = arith.constant 0 : i32
    %c0_i32_1 = arith.constant 0 : i32
    return %c0_i32, %c0_i32_0 : i32, i32
  }
  func.func @transform_1(%arg0: i32, %arg1: i32, %arg2: memref<1xi32, #tpu.memory_space<smem>>) -> (i32, i32) {
    %c0_i32 = arith.constant 0 : i32
    %c0_i32_0 = arith.constant 0 : i32
    %c0_i32_1 = arith.constant 0 : i32
    return %c0_i32, %c0_i32_0 : i32, i32
  }
  func.func @transform_2(%arg0: i32, %arg1: i32, %arg2: memref<1xi32, #tpu.memory_space<smem>>) -> (i32, i32) {
    %c1_i32 = arith.constant 1 : i32
    %0 = arith.muli %arg0, %c1_i32 : i32
    %1 = arith.addi %0, %arg1 : i32
    %c0_i32 = arith.constant 0 : i32
    %2 = arith.minsi %1, %c0_i32 : i32
    %c0_i32_0 = arith.constant 0 : i32
    %c0_i32_1 = arith.constant 0 : i32
    return %c0_i32_0, %2 : i32, i32
  }
  func.func @transform_3(%arg0: i32, %arg1: i32, %arg2: memref<1xi32, #tpu.memory_space<smem>>) -> (i32, i32) {
    %c1_i32 = arith.constant 1 : i32
    %0 = arith.muli %arg0, %c1_i32 : i32
    %1 = arith.addi %0, %arg1 : i32
    %c0_i32 = arith.constant 0 : i32
    %2 = arith.minsi %1, %c0_i32 : i32
    %c0_i32_0 = arith.constant 0 : i32
    %c0_i32_1 = arith.constant 0 : i32
    return %c0_i32_0, %2 : i32, i32
  }
  func.func @transform_4(%arg0: i32, %arg1: i32, %arg2: memref<1xi32, #tpu.memory_space<smem>>) -> (i32, i32, i32) {
    %c0_i32 = arith.constant 0 : i32
    %c0_i32_0 = arith.constant 0 : i32
    %c0_i32_1 = arith.constant 0 : i32
    return %arg0, %c0_i32, %c0_i32_0 : i32, i32, i32
  }
}

</mosaic_0001>

<llo_original>
// kernel: tpu_custom_call.1
$region0: #{tpu_custom_call.1}
  #allocation0 [shape = 'u32[]', space=smem, size = 0x4, offset = 0x4, fixed_abs, tag = 'smem constant byte address 0x4 - core index']
  #allocation1 [shape = 'u32[144,128]{1,0:T(1,128)}', space=vmem, size = 0x12000, scoped, tag = 'internal scratch']
  #allocation2 [shape = 's32[1]{0}', space=sflag, size = 0x4, scoped, tag = 'scoped memory for tpu_custom_call.1']
  #allocation3 [shape = 's32[1]{0:T(128)S(6)}', space=smem, size = 0x200, scoped, tag = 'prefetched SMEM operand 0']
  %s0 = inlined_call_operand.<no memory space> [shape: s32[1], index: 0, kind: input, shape index: {}]
  %s1 = inlined_call_operand.vmem [shape: f32[80,8], index: 1, kind: input, shape index: {}]
  %s2 = inlined_call_operand.vmem [shape: f32[80,8], index: 2, kind: input, shape index: {}]
  %s3 = inlined_call_operand.vmem [shape: f32[8,128], index: 3, kind: input, shape index: {}]
  %s4 = inlined_call_operand.vmem [shape: f32[8,128], index: 4, kind: input, shape index: {}]
  %s5 = inlined_call_operand.hbm [shape: f32[2,1,128], index: 5, kind: output, shape index: {}]
  %s6 = sld [smem:[#allocation0]]
  $region61: #{tpu_custom_call.1} parent=0
    _
  %s8 = ssub.s32 1, %s6
  %s9 = scalar_select 0, %s8, %s6
  %10 = sst [smem:[#allocation3]] %s0
  $region1: #{tpu_custom_call.1} parent=0
    #allocation4 [shape = 'u8[1024]{0}', space=vmem, size = 0x400, scoped, tag = 'output window, operand 0']
    #allocation5 [shape = 's32[2]{0}', space=sflag, size = 0x8, scoped, tag = 'scoped memory for tpu_custom_call.1']
    %11 = vsyncpa [#allocation5], 0
    %s12 = scalar_lea.sflag [#allocation5], 1
    %13 = vsyncpa %s12, 0
    loop: start=0, step=1, limit=4
    $region2: #{tpu_custom_call.1} parent=1 // loop_pre_header
      _
    $region3: #{tpu_custom_call.1} parent=1 // loop_header
      %s15 = sphi 0, %s19
      %p16 = scmp.ge.s32.totalorder %s15, 4
      %s22 = sphi 0, %s34
      %s23 = sphi 0, %s30
      %s24 = sphi 0, %s22
      %s25 = sphi 0, %s23
      %s26 = sphi 0, %s24
      %s27 = sphi 0, %s25
      %s35 = sphi 0, %s35
      %s37 = sphi 0, %s35
      %s38 = sphi 0, %s37
      %s52 = sphi 0, %s38
      %s56 = sphi 0, %s56
      %s58 = sphi 0, %s56
      %s59 = sphi 0, %s58
      %s73 = sphi 0, %s59
      %s85 = sphi 0, %s87
      %s88 = sphi 0, %s85
      %s89 = sphi 0, %s88
      %s105 = sphi 0, %s89
      %s117 = sphi 0, %s119
      %s120 = sphi 0, %s117
      %s121 = sphi 0, %s120
      %s137 = sphi 0, %s121
      %s143 = sphi 0, %s145
      %s146 = sphi 0, %s143
      %s147 = sphi 0, %s146
      %s163 = sphi 0, %s147
    $region4: #{tpu_custom_call.1} parent=1 // loop_header_branch
      %18 = sbr.rel (%p16) target = $region8
    $region5: #{tpu_custom_call.1} parent=1 // loop_body
      %s20 = ssub.s32 %s15, 1
      %s21 = ssub.s32 %s15, 2
      %s28 = sadd.s32 1, %s23
      %p29 = scmp.ge.s32.totalorder %s28, 1
      %s30 = scalar_select %p29, 0, %s28
      %s31 = sadd.s32 1, %s22
      %s32 = scalar_select %p29, %s31, %s22
      %p33 = scmp.ge.s32.totalorder %s32, 2
      %s34 = scalar_select %p33, 0, %s32
      %s36 = sadd.s32 %s35, 1
      %p39 = scmp.eq.s32.totalorder %s15, 1
      %p40 = scmp.ne.s32.totalorder %s35, %s37
      %p41 = scmp.eq.s32.totalorder %s15, 0
      %p42 = por %p40, %p41
      %p43 = scmp.ne.s32.totalorder %s35, %s37
      %p44 = scmp.eq.s32.totalorder %s20, 1
      %p45 = por %p43, %p44
      %p46 = scmp.ne.s32.totalorder %s37, %s38
      %p47 = scmp.eq.s32.totalorder %s20, 0
      %p48 = por %p46, %p47
      %p49 = scmp.ne.s32.totalorder %s37, %s38
      %p50 = scmp.eq.s32.totalorder %s21, 1
      %p51 = por %p49, %p50
      %p53 = scmp.ne.s32.totalorder %s38, %s52
      %p54 = scmp.eq.s32.totalorder %s21, 0
      %p55 = por %p53, %p54
      %s57 = sadd.s32 %s56, 1
      %p60 = scmp.eq.s32.totalorder %s15, 1
      %p61 = scmp.ne.s32.totalorder %s56, %s58
      %p62 = scmp.eq.s32.totalorder %s15, 0
      %p63 = por %p61, %p62
      %p64 = scmp.ne.s32.totalorder %s56, %s58
      %p65 = scmp.eq.s32.totalorder %s20, 1
      %p66 = por %p64, %p65
      %p67 = scmp.ne.s32.totalorder %s58, %s59
      %p68 = scmp.eq.s32.totalorder %s20, 0
      %p69 = por %p67, %p68
      %p70 = scmp.ne.s32.totalorder %s58, %s59
      %p71 = scmp.eq.s32.totalorder %s21, 1
      %p72 = por %p70, %p71
      %p74 = scmp.ne.s32.totalorder %s59, %s73
      %p75 = scmp.eq.s32.totalorder %s21, 0
      %p76 = por %p74, %p75
      %s77 = sadd.s32 %s22, %s23
      %p78 = scmp.lt.s32.totalorder %s77, 0
      %s79 = scalar_select %p78, %s77, 0
      %s80 = sadd.s32 %s34, %s30
      %p81 = scmp.lt.s32.totalorder %s80, 0
      %s82 = scalar_select %p81, %s80, 0
      %s83 = ssub.s32 %s79, %s82
      %p84 = scmp.eq.s32.totalorder %s83, 0
      %s86 = sadd.s32 %s85, 1
      %s87 = scalar_select %p84, %s85, %s86
      %p90 = pneg %p84
      %p91 = scmp.eq.s32.totalorder %s15, 1
      %p92 = por %p90, %p91
      %p93 = scmp.ne.s32.totalorder %s85, %s88
      %p94 = scmp.eq.s32.totalorder %s15, 0
      %p95 = por %p93, %p94
      %p96 = scmp.ne.s32.totalorder %s85, %s88
      %p97 = scmp.eq.s32.totalorder %s20, 1
      %p98 = por %p96, %p97
      %p99 = scmp.ne.s32.totalorder %s88, %s89
      %p100 = scmp.eq.s32.totalorder %s20, 0
      %p101 = por %p99, %p100
      %p102 = scmp.ne.s32.totalorder %s88, %s89
      %p103 = scmp.eq.s32.totalorder %s21, 1
      %p104 = por %p102, %p103
      %p106 = scmp.ne.s32.totalorder %s89, %s105
      %p107 = scmp.eq.s32.totalorder %s21, 0
      %p108 = por %p106, %p107
      %s109 = sadd.s32 %s22, %s23
      %p110 = scmp.lt.s32.totalorder %s109, 0
      %s111 = scalar_select %p110, %s109, 0
      %s112 = sadd.s32 %s34, %s30
      %p113 = scmp.lt.s32.totalorder %s112, 0
      %s114 = scalar_select %p113, %s112, 0
      %s115 = ssub.s32 %s111, %s114
      %p116 = scmp.eq.s32.totalorder %s115, 0
      %s118 = sadd.s32 %s117, 1
      %s119 = scalar_select %p116, %s117, %s118
      %p122 = pneg %p116
      %p123 = scmp.eq.s32.totalorder %s15, 1
      %p124 = por %p122, %p123
      %p125 = scmp.ne.s32.totalorder %s117, %s120
      %p126 = scmp.eq.s32.totalorder %s15, 0
      %p127 = por %p125, %p126
      %p128 = scmp.ne.s32.totalorder %s117, %s120
      %p129 = scmp.eq.s32.totalorder %s20, 1
      %p130 = por %p128, %p129
      %p131 = scmp.ne.s32.totalorder %s120, %s121
      %p132 = scmp.eq.s32.totalorder %s20, 0
      %p133 = por %p131, %p132
      %p134 = scmp.ne.s32.totalorder %s120, %s121
      %p135 = scmp.eq.s32.totalorder %s21, 1
      %p136 = por %p134, %p135
      %p138 = scmp.ne.s32.totalorder %s121, %s137
      %p139 = scmp.eq.s32.totalorder %s21, 0
      %p140 = por %p138, %p139
      %s141 = ssub.s32 %s22, %s34
      %p142 = scmp.eq.s32.totalorder %s141, 0
      %s144 = sadd.s32 %s143, 1
      %s145 = scalar_select %p142, %s143, %s144
      %p148 = pneg %p142
      %p149 = scmp.eq.s32.totalorder %s15, 1
      %p150 = por %p148, %p149
      %p151 = scmp.ne.s32.totalorder %s143, %s146
      %p152 = scmp.eq.s32.totalorder %s15, 0
      %p153 = por %p151, %p152
      %p154 = scmp.ne.s32.totalorder %s143, %s146
      %p155 = scmp.eq.s32.totalorder %s20, 1
      %p156 = por %p154, %p155
      %p157 = scmp.ne.s32.totalorder %s146, %s147
      %p158 = scmp.eq.s32.totalorder %s20, 0
      %p159 = por %p157, %p158
      %p160 = scmp.ne.s32.totalorder %s146, %s147
      %p161 = scmp.eq.s32.totalorder %s21, 1
      %p162 = por %p160, %p161
      %p164 = scmp.ne.s32.totalorder %s147, %s163
      %p165 = scmp.eq.s32.totalorder %s21, 0
      %p166 = por %p164, %p165
      %p167 = scmp.le.s32.totalorder 1, %s15
      %p168 = scmp.lt.s32.totalorder %s15, 3
      %p169 = pnand %p167, %p168
      %p170 = pneg %p169
      // Predicated region
      $region9: #{tpu_custom_call.1} parent=5 // pred_check
        _
      $region10: #{tpu_custom_call.1} parent=5 // pred_check_branch
        %172 = sbr.rel (%p169) target = $region12
      $region11: #{tpu_custom_call.1} parent=5 // pred_region
        %s173 = ssub.s32 %s15, 1
        // Predicated region
        $region13: #{tpu_custom_call.1} parent=11 // pred_check
          %p174 = pneg %p48
        $region14: #{tpu_custom_call.1} parent=11 // pred_check_branch
          %176 = sbr.rel (%p174) target = $region16
        $region15: #{tpu_custom_call.1} parent=11 // pred_region
          _
        $region16: #{tpu_custom_call.1} parent=11 // pred_fallthru
          _
        // Predicated region
        $region17: #{tpu_custom_call.1} parent=11 // pred_check
          %p177 = pneg %p69
        $region18: #{tpu_custom_call.1} parent=11 // pred_check_branch
          %179 = sbr.rel (%p177) target = $region20
        $region19: #{tpu_custom_call.1} parent=11 // pred_region
          _
        $region20: #{tpu_custom_call.1} parent=11 // pred_fallthru
          _
      $region12: #{tpu_custom_call.1} parent=5 // pred_fallthru
        _
      %p180 = scmp.lt.s32.totalorder %s15, 2
      // Predicated region
      $region21: #{tpu_custom_call.1} parent=5 // pred_check
        %p181 = pneg %p180
      $region22: #{tpu_custom_call.1} parent=5 // pred_check_branch
        %183 = sbr.rel (%p181) target = $region24
      $region23: #{tpu_custom_call.1} parent=5 // pred_region
        // Predicated region
        $region25: #{tpu_custom_call.1} parent=23 // pred_check
          %p184 = pneg %p95
        $region26: #{tpu_custom_call.1} parent=23 // pred_check_branch
          %186 = sbr.rel (%p184) target = $region28
        $region27: #{tpu_custom_call.1} parent=23 // pred_region
          %s187 = sadd.s32 %s22, %s23
          %p188 = scmp.lt.s32.totalorder %s187, 0
          %s189 = scalar_select %p188, %s187, 0
          %p190 = scmp.lt.s32.totalorder %s189, 0
          %s191 = scalar_select %p190, %s189, 0
          %s192 = smul.addr %s191, 8
          %s193 = scalar_lea.vmem %s3, %s192
          %s194 = sadd.s32 %s22, %s23
          %p195 = scmp.lt.s32.totalorder %s194, 0
          %s196 = scalar_select %p195, %s194, 0
        $region28: #{tpu_custom_call.1} parent=23 // pred_fallthru
          _
        // Predicated region
        $region29: #{tpu_custom_call.1} parent=23 // pred_check
          %p197 = pneg %p127
        $region30: #{tpu_custom_call.1} parent=23 // pred_check_branch
          %199 = sbr.rel (%p197) target = $region32
        $region31: #{tpu_custom_call.1} parent=23 // pred_region
          %s200 = sadd.s32 %s22, %s23
          %p201 = scmp.lt.s32.totalorder %s200, 0
          %s202 = scalar_select %p201, %s200, 0
          %p203 = scmp.lt.s32.totalorder %s202, 0
          %s204 = scalar_select %p203, %s202, 0
          %s205 = smul.addr %s204, 8
          %s206 = scalar_lea.vmem %s4, %s205
          %s207 = sadd.s32 %s22, %s23
          %p208 = scmp.lt.s32.totalorder %s207, 0
          %s209 = scalar_select %p208, %s207, 0
        $region32: #{tpu_custom_call.1} parent=23 // pred_fallthru
          _
      $region24: #{tpu_custom_call.1} parent=5 // pred_fallthru
        _
      %p210 = scmp.le.s32.totalorder 1, %s15
      %p211 = scmp.lt.s32.totalorder %s15, 3
      %p212 = pnand %p210, %p211
      %p213 = pneg %p212
      // Predicated region
      $region33: #{tpu_custom_call.1} parent=5 // pred_check
        _
      $region34: #{tpu_custom_call.1} parent=5 // pred_check_branch
        %215 = sbr.rel (%p212) target = $region36
      $region35: #{tpu_custom_call.1} parent=5 // pred_region
        %s216 = ssub.s32 %s15, 1
        %p217 = pneg %p48
        %p218 = pneg %p45
        %p219 = pneg %p69
        %p220 = pneg %p66
        %s221 = sadd.s32 %s24, %s25
        %p222 = scmp.lt.s32.totalorder %s221, 0
        %s223 = scalar_select %p222, %s221, 0
        %p224 = scmp.lt.s32.totalorder %s223, 0
        %s225 = scalar_select %p224, %s223, 0
        %s226 = smul.addr %s225, 8
        %s227 = scalar_lea.vmem %s3, %s226
        %p228 = pneg %p101
        %p229 = pneg %p98
        %s230 = sadd.s32 %s24, %s25
        %p231 = scmp.lt.s32.totalorder %s230, 0
        %s232 = scalar_select %p231, %s230, 0
        %p233 = scmp.lt.s32.totalorder %s232, 0
        %s234 = scalar_select %p233, %s232, 0
        %s235 = smul.addr %s234, 8
        %s236 = scalar_lea.vmem %s4, %s235
        %p237 = pneg %p133
        %p238 = pneg %p130
        %p239 = pneg %p159
        %p240 = pneg %p156
        %s241 = sand.u32 %s146, 1
        %s242 = scalar_lea.sflag [#allocation5], %s241
        %s243 = sand.u32 %s146, 1
        %s244 = scalar_lea.vmem [#allocation4], %s243
        %s245 = sadd.s32 %s24, %s25
        %p246 = scmp.lt.s32.totalorder %s245, 0
        %s247 = scalar_select %p246, %s245, 0
        %p248 = scmp.lt.s32.totalorder %s247, 0
        %s249 = scalar_select %p248, %s247, 0
        %s250 = smul.addr %s249, 8
        %s251 = scalar_lea.vmem %s3, %s250
        %s252 = sadd.s32 %s24, %s25
        %p253 = scmp.lt.s32.totalorder %s252, 0
        %s254 = scalar_select %p253, %s252, 0
        %s255 = sadd.s32 %s24, %s25
        %p256 = scmp.lt.s32.totalorder %s255, 0
        %s257 = scalar_select %p256, %s255, 0
        %p258 = scmp.lt.s32.totalorder %s257, 0
        %s259 = scalar_select %p258, %s257, 0
        %s260 = smul.addr %s259, 8
        %s261 = scalar_lea.vmem %s4, %s260
        %s262 = sadd.s32 %s24, %s25
        %p263 = scmp.lt.s32.totalorder %s262, 0
        %s264 = scalar_select %p263, %s262, 0
        %p265 = scmp.eq.s32.totalorder %s25, 0
        // Predicated region
        $region37: #{tpu_custom_call.1} parent=35 // pred_check
          %p266 = pneg %p265
        $region38: #{tpu_custom_call.1} parent=35 // pred_check_branch
          %268 = sbr.rel (%p266) target = $region40
        $region39: #{tpu_custom_call.1} parent=35 // pred_region
          %269 = vst [vmem:[%s244] sm:$0x1] 0.0
        $region40: #{tpu_custom_call.1} parent=35 // pred_fallthru
          _
        %v270 = vld [vmem:[%s1] sm:$0xff]
        %v271 = vld [vmem:[%s1 + $0x8] sm:$0xff]
        %v272 = vld [vmem:[%s1 + $0x10] sm:$0xff]
        %v273 = vld [vmem:[%s1 + $0x18] sm:$0xff]
        %v274 = vld [vmem:[%s1 + $0x20] sm:$0xff]
        %v275 = vld [vmem:[%s1 + $0x28] sm:$0xff]
        %v276 = vld [vmem:[%s1 + $0x30] sm:$0xff]
        %v277 = vld [vmem:[%s1 + $0x38] sm:$0xff]
        %v278 = vld [vmem:[%s1 + $0x40] sm:$0xff]
        %v279 = vld [vmem:[%s1 + $0x48] sm:$0xff]
        %v280 = vld [vmem:[%s251] sm:$0xff]
        %v281 = vld [vmem:[%s2] sm:$0xff]
        %v282 = vld [vmem:[%s2 + $0x8] sm:$0xff]
        %v283 = vld [vmem:[%s2 + $0x10] sm:$0xff]
        %v284 = vld [vmem:[%s2 + $0x18] sm:$0xff]
        %v285 = vld [vmem:[%s2 + $0x20] sm:$0xff]
        %v286 = vld [vmem:[%s2 + $0x28] sm:$0xff]
        %v287 = vld [vmem:[%s2 + $0x30] sm:$0xff]
        %v288 = vld [vmem:[%s2 + $0x38] sm:$0xff]
        %v289 = vld [vmem:[%s2 + $0x40] sm:$0xff]
        %v290 = vld [vmem:[%s2 + $0x48] sm:$0xff]
        %v291 = vld [vmem:[%s261] sm:$0xff]
        %vm292 = vcmask 64512
        %v294 = vsel %vm292, %v281, 0
        %v297 = vsel %vm292, %v282, 0
        %v300 = vsel %vm292, %v283, 0
        %v303 = vsel %vm292, %v284, 0
        %v306 = vsel %vm292, %v285, 0
        %v309 = vsel %vm292, %v286, 0
        %v312 = vsel %vm292, %v287, 0
        %v315 = vsel %vm292, %v288, 0
        %v318 = vsel %vm292, %v289, 0
        %v321 = vsel %vm292, %v290, 0
        %323 = vmatprep.subr.mxu0 0.0
        %324 = vmatpush1.msra.mxu0 %v291
        %325 = vmatprep.subr.mxu0 0.0
        %326 = vmatpush1.msra.mxu0 0.0
        %327 = vmatprep.subr.mxu0 0.0
        %328 = vmatpush1.msra.mxu0 0.0
        %329 = vmatprep.subr.mxu0 0.0
        %330 = vmatpush1.msra.mxu0 0.0
        %331 = vmatprep.subr.mxu0 0.0
        %332 = vmatpush1.msra.mxu0 0.0
        %333 = vmatprep.subr.mxu0 0.0
        %334 = vmatpush1.msra.mxu0 0.0
        %335 = vmatprep.subr.mxu0 0.0
        %336 = vmatpush1.msra.mxu0 0.0
        %337 = vmatprep.subr.mxu0 0.0
        %338 = vmatpush1.msra.mxu0 0.0
        %339 = vmatprep.subr.mxu0 0.0
        %340 = vmatpush1.msra.mxu0 0.0
        %341 = vmatprep.subr.mxu0 0.0
        %342 = vmatpush1.msra.mxu0 0.0
        %343 = vmatprep.subr.mxu0 0.0
        %344 = vmatpush1.msra.mxu0 0.0
        %345 = vmatprep.subr.mxu0 0.0
        %346 = vmatpush1.msra.mxu0 0.0
        %347 = vmatprep.subr.mxu0 0.0
        %348 = vmatpush1.msra.mxu0 0.0
        %349 = vmatprep.subr.mxu0 0.0
        %350 = vmatpush1.msra.mxu0 0.0
        %351 = vmatprep.subr.mxu0 0.0
        %352 = vmatpush1.msra.mxu0 0.0
        %353 = vmatprep.subr.mxu0 0.0
        %354 = vmatpush1.msra.mxu0 0.0
        %355 = vmatprep.subr.mxu0 0.0
        %356 = vmatpush1.msra.mxu0 0.0
        %357 = vmatprep.subr.mxu0 0.0
        %358 = vmatpush1.msra.mxu0 0.0
        %359 = vmatprep.subr.mxu0 0.0
        %360 = vmatpush1.msra.mxu0 0.0
        %361 = vmatprep.subr.mxu0 0.0
        %362 = vmatpush1.msra.mxu0 0.0
        %363 = vmatprep.subr.mxu0 0.0
        %364 = vmatpush1.msra.mxu0 0.0
        %365 = vmatprep.subr.mxu0 0.0
        %366 = vmatpush1.msra.mxu0 0.0
        %367 = vmatprep.subr.mxu0 0.0
        %368 = vmatpush1.msra.mxu0 0.0
        %369 = vmatprep.subr.mxu0 0.0
        %370 = vmatpush1.msra.mxu0 0.0
        %371 = vmatprep.subr.mxu0 0.0
        %372 = vmatpush1.msra.mxu0 0.0
        %373 = vmatprep.subr.mxu0 0.0
        %374 = vmatpush1.msra.mxu0 0.0
        %375 = vmatprep.subr.mxu0 0.0
        %376 = vmatpush1.msra.mxu0 0.0
        %377 = vmatprep.subr.mxu0 0.0
        %378 = vmatpush1.msra.mxu0 0.0
        %379 = vmatprep.subr.mxu0 0.0
        %380 = vmatpush1.msra.mxu0 0.0
        %381 = vmatprep.subr.mxu0 0.0
        %382 = vmatpush1.msra.mxu0 0.0
        %383 = vmatprep.subr.mxu0 0.0
        %384 = vmatpush1.msra.mxu0 0.0
        %385 = vmatprep.subr.mxu0 0.0
        %386 = vmatpush1.msra.mxu0 0.0
        %387 = vmatprep.mubr.f32.mxu0 0.0
        %388 = vmatmul.mubr.f32.gmra.mrb[0].mxu0 %v294
        %v389 = vpop.f32.mrb[0].mxu0
        %v390 = vadd.f32 0.0, %v389
        %v391 = vpop.f32.mrb[0].mxu0
        %392 = vmatprep.mubr.f32.mxu0 0.0
        %393 = vmatmul.mubr.f32.gmra.mrb[0].mxu0 %v297
        %v394 = vpop.f32.mrb[0].mxu0
        %v395 = vadd.f32 0.0, %v394
        %v396 = vpop.f32.mrb[0].mxu0
        %397 = vmatprep.mubr.f32.mxu0 0.0
        %398 = vmatmul.mubr.f32.gmra.mrb[0].mxu0 %v300
        %v399 = vpop.f32.mrb[0].mxu0
        %v400 = vadd.f32 0.0, %v399
        %v401 = vpop.f32.mrb[0].mxu0
        %402 = vmatprep.mubr.f32.mxu0 0.0
        %403 = vmatmul.mubr.f32.gmra.mrb[0].mxu0 %v303
        %v404 = vpop.f32.mrb[0].mxu0
        %v405 = vadd.f32 0.0, %v404
        %v406 = vpop.f32.mrb[0].mxu0
        %407 = vmatprep.mubr.f32.mxu0 0.0
        %408 = vmatmul.mubr.f32.gmra.mrb[0].mxu0 %v306
        %v409 = vpop.f32.mrb[0].mxu0
        %v410 = vadd.f32 0.0, %v409
        %v411 = vpop.f32.mrb[0].mxu0
        %412 = vmatprep.mubr.f32.mxu0 0.0
        %413 = vmatmul.mubr.f32.gmra.mrb[0].mxu0 %v309
        %v414 = vpop.f32.mrb[0].mxu0
        %v415 = vadd.f32 0.0, %v414
        %v416 = vpop.f32.mrb[0].mxu0
        %417 = vmatprep.mubr.f32.mxu0 0.0
        %418 = vmatmul.mubr.f32.gmra.mrb[0].mxu0 %v312
        %v419 = vpop.f32.mrb[0].mxu0
        %v420 = vadd.f32 0.0, %v419
        %v421 = vpop.f32.mrb[0].mxu0
        %422 = vmatprep.mubr.f32.mxu0 0.0
        %423 = vmatmul.mubr.f32.gmra.mrb[0].mxu0 %v315
        %v424 = vpop.f32.mrb[0].mxu0
        %v425 = vadd.f32 0.0, %v424
        %v426 = vpop.f32.mrb[0].mxu0
        %427 = vmatprep.mubr.f32.mxu0 0.0
        %428 = vmatmul.mubr.f32.gmra.mrb[0].mxu0 %v318
        %v429 = vpop.f32.mrb[0].mxu0
        %v430 = vadd.f32 0.0, %v429
        %v431 = vpop.f32.mrb[0].mxu0
        %432 = vmatprep.mubr.f32.mxu0 0.0
        %433 = vmatmul.mubr.f32.gmra.mrb[0].mxu0 %v321
        %v434 = vpop.f32.mrb[0].mxu0
        %v435 = vadd.f32 0.0, %v434
        %v436 = vpop.f32.mrb[0].mxu0
        %437 = vdwg.mxu0
        %v439 = vsel %vm292, %v270, 0
        %v442 = vsel %vm292, %v271, 0
        %v445 = vsel %vm292, %v272, 0
        %v448 = vsel %vm292, %v273, 0
        %v451 = vsel %vm292, %v274, 0
        %v454 = vsel %vm292, %v275, 0
        %v457 = vsel %vm292, %v276, 0
        %v460 = vsel %vm292, %v277, 0
        %v463 = vsel %vm292, %v278, 0
        %v466 = vsel %vm292, %v279, 0
        %468 = vmatprep.subr.mxu0 0.0
        %469 = vmatpush1.msra.mxu0 %v280
        %470 = vmatprep.subr.mxu0 0.0
        %471 = vmatpush1.msra.mxu0 0.0
        %472 = vmatprep.subr.mxu0 0.0
        %473 = vmatpush1.msra.mxu0 0.0
        %474 = vmatprep.subr.mxu0 0.0
        %475 = vmatpush1.msra.mxu0 0.0
        %476 = vmatprep.subr.mxu0 0.0
        %477 = vmatpush1.msra.mxu0 0.0
        %478 = vmatprep.subr.mxu0 0.0
        %479 = vmatpush1.msra.mxu0 0.0
        %480 = vmatprep.subr.mxu0 0.0
        %481 = vmatpush1.msra.mxu0 0.0
        %482 = vmatprep.subr.mxu0 0.0
        %483 = vmatpush1.msra.mxu0 0.0
        %484 = vmatprep.subr.mxu0 0.0
        %485 = vmatpush1.msra.mxu0 0.0
        %486 = vmatprep.subr.mxu0 0.0
        %487 = vmatpush1.msra.mxu0 0.0
        %488 = vmatprep.subr.mxu0 0.0
        %489 = vmatpush1.msra.mxu0 0.0
        %490 = vmatprep.subr.mxu0 0.0
        %491 = vmatpush1.msra.mxu0 0.0
        %492 = vmatprep.subr.mxu0 0.0
        %493 = vmatpush1.msra.mxu0 0.0
        %494 = vmatprep.subr.mxu0 0.0
        %495 = vmatpush1.msra.mxu0 0.0
        %496 = vmatprep.subr.mxu0 0.0
        %497 = vmatpush1.msra.mxu0 0.0
        %498 = vmatprep.subr.mxu0 0.0
        %499 = vmatpush1.msra.mxu0 0.0
        %500 = vmatprep.subr.mxu0 0.0
        %501 = vmatpush1.msra.mxu0 0.0
        %502 = vmatprep.subr.mxu0 0.0
        %503 = vmatpush1.msra.mxu0 0.0
        %504 = vmatprep.subr.mxu0 0.0
        %505 = vmatpush1.msra.mxu0 0.0
        %506 = vmatprep.subr.mxu0 0.0
        %507 = vmatpush1.msra.mxu0 0.0
        %508 = vmatprep.subr.mxu0 0.0
        %509 = vmatpush1.msra.mxu0 0.0
        %510 = vmatprep.subr.mxu0 0.0
        %511 = vmatpush1.msra.mxu0 0.0
        %512 = vmatprep.subr.mxu0 0.0
        %513 = vmatpush1.msra.mxu0 0.0
        %514 = vmatprep.subr.mxu0 0.0
        %515 = vmatpush1.msra.mxu0 0.0
        %516 = vmatprep.subr.mxu0 0.0
        %517 = vmatpush1.msra.mxu0 0.0
        %518 = vmatprep.subr.mxu0 0.0
        %519 = vmatpush1.msra.mxu0 0.0
        %520 = vmatprep.subr.mxu0 0.0
        %521 = vmatpush1.msra.mxu0 0.0
        %522 = vmatprep.subr.mxu0 0.0
        %523 = vmatpush1.msra.mxu0 0.0
        %524 = vmatprep.subr.mxu0 0.0
        %525 = vmatpush1.msra.mxu0 0.0
        %526 = vmatprep.subr.mxu0 0.0
        %527 = vmatpush1.msra.mxu0 0.0
        %528 = vmatprep.subr.mxu0 0.0
        %529 = vmatpush1.msra.mxu0 0.0
        %530 = vmatprep.subr.mxu0 0.0
        %531 = vmatpush1.msra.mxu0 0.0
        %532 = vmatprep.mubr.f32.mxu0 0.0
        %533 = vmatmul.mubr.f32.gmra.mrb[0].mxu0 %v439
        %v534 = vpop.f32.mrb[0].mxu0
        %v535 = vadd.f32 %v390, %v534
        %v536 = vpop.f32.mrb[0].mxu0
        %537 = vmatprep.mubr.f32.mxu0 0.0
        %538 = vmatmul.mubr.f32.gmra.mrb[0].mxu0 %v442
        %v539 = vpop.f32.mrb[0].mxu0
        %v540 = vadd.f32 %v395, %v539
        %v541 = vpop.f32.mrb[0].mxu0
        %542 = vmatprep.mubr.f32.mxu0 0.0
        %543 = vmatmul.mubr.f32.gmra.mrb[0].mxu0 %v445
        %v544 = vpop.f32.mrb[0].mxu0
        %v545 = vadd.f32 %v400, %v544
        %v546 = vpop.f32.mrb[0].mxu0
        %547 = vmatprep.mubr.f32.mxu0 0.0
        %548 = vmatmul.mubr.f32.gmra.mrb[0].mxu0 %v448
        %v549 = vpop.f32.mrb[0].mxu0
        %v550 = vadd.f32 %v405, %v549
        %v551 = vpop.f32.mrb[0].mxu0
        %552 = vmatprep.mubr.f32.mxu0 0.0
        %553 = vmatmul.mubr.f32.gmra.mrb[0].mxu0 %v451
        %v554 = vpop.f32.mrb[0].mxu0
        %v555 = vadd.f32 %v410, %v554
        %v556 = vpop.f32.mrb[0].mxu0
        %557 = vmatprep.mubr.f32.mxu0 0.0
        %558 = vmatmul.mubr.f32.gmra.mrb[0].mxu0 %v454
        %v559 = vpop.f32.mrb[0].mxu0
        %v560 = vadd.f32 %v415, %v559
        %v561 = vpop.f32.mrb[0].mxu0
        %562 = vmatprep.mubr.f32.mxu0 0.0
        %563 = vmatmul.mubr.f32.gmra.mrb[0].mxu0 %v457
        %v564 = vpop.f32.mrb[0].mxu0
        %v565 = vadd.f32 %v420, %v564
        %v566 = vpop.f32.mrb[0].mxu0
        %567 = vmatprep.mubr.f32.mxu0 0.0
        %568 = vmatmul.mubr.f32.gmra.mrb[0].mxu0 %v460
        %v569 = vpop.f32.mrb[0].mxu0
        %v570 = vadd.f32 %v425, %v569
        %v571 = vpop.f32.mrb[0].mxu0
        %572 = vmatprep.mubr.f32.mxu0 0.0
        %573 = vmatmul.mubr.f32.gmra.mrb[0].mxu0 %v463
        %v574 = vpop.f32.mrb[0].mxu0
        %v575 = vadd.f32 %v430, %v574
        %v576 = vpop.f32.mrb[0].mxu0
        %577 = vmatprep.mubr.f32.mxu0 0.0
        %578 = vmatmul.mubr.f32.gmra.mrb[0].mxu0 %v466
        %v579 = vpop.f32.mrb[0].mxu0
        %v580 = vadd.f32 %v435, %v579
        %v581 = vpop.f32.mrb[0].mxu0
        %582 = vdwg.mxu0
        %v583 = vmul.f32 %v535, %v545
        %v584 = vmul.f32 %v540, %v550
        %v585 = vsub.f32 %v583, %v584
        %v586 = vmul.f32 %v535, %v550
        %v587 = vmul.f32 %v540, %v545
        %v588 = vadd.f32 %v586, %v587
        %v589 = vmul.f32 %v585, %v585
        %v590 = vmul.f32 %v588, %v588
        %v591 = vsub.f32 %v589, %v590
        %v592 = vmul.f32 %v585, %v588
        %v593 = vmul.f32 %v592, 2.0
        %v594 = vmul.f32 %v535, %v555
        %v595 = vmul.f32 %v540, %v560
        %v596 = vsub.f32 %v594, %v595
        %v597 = vmul.f32 %v535, %v560
        %v598 = vmul.f32 %v540, %v555
        %v599 = vadd.f32 %v597, %v598
        %v600 = vmul.f32 %v565, %v575
        %v601 = vmul.f32 %v570, %v580
        %v602 = vsub.f32 %v600, %v601
        %v603 = vmul.f32 %v565, %v580
        %v604 = vmul.f32 %v570, %v575
        %v605 = vadd.f32 %v603, %v604
        %v606 = vmul.f32 %v596, %v602
        %v607 = vmul.f32 %v599, %v605
        %v608 = vsub.f32 %v606, %v607
        %v609 = vmul.f32 %v596, %v605
        %v610 = vmul.f32 %v599, %v602
        %v611 = vadd.f32 %v609, %v610
        %v612 = vrot.slane %v585, 4
        %v613 = vadd.f32 %v585, %v612
        %v614 = vrot.slane %v613, 2
        %v615 = vadd.f32 %v613, %v614
        %v616 = vrot.slane %v615, 1
        %v617 = vadd.f32 %v615, %v616
        %v618 = vrot.slane %v588, 4
        %v619 = vadd.f32 %v588, %v618
        %v620 = vrot.slane %v619, 2
        %v621 = vadd.f32 %v619, %v620
        %v622 = vrot.slane %v621, 1
        %v623 = vadd.f32 %v621, %v622
        %v624 = vrot.slane %v591, 4
        %v625 = vadd.f32 %v591, %v624
        %v626 = vrot.slane %v625, 2
        %v627 = vadd.f32 %v625, %v626
        %v628 = vrot.slane %v627, 1
        %v629 = vadd.f32 %v627, %v628
        %v630 = vrot.slane %v593, 4
        %v631 = vadd.f32 %v593, %v630
        %v632 = vrot.slane %v631, 2
        %v633 = vadd.f32 %v631, %v632
        %v634 = vrot.slane %v633, 1
        %v635 = vadd.f32 %v633, %v634
        %v636 = vrot.slane %v608, 4
        %v637 = vadd.f32 %v608, %v636
        %v638 = vrot.slane %v637, 2
        %v639 = vadd.f32 %v637, %v638
        %v640 = vrot.slane %v639, 1
        %v641 = vadd.f32 %v639, %v640
        %v642 = vrot.slane %v611, 4
        %v643 = vadd.f32 %v611, %v642
        %v644 = vrot.slane %v643, 2
        %v645 = vadd.f32 %v643, %v644
        %v646 = vrot.slane %v645, 1
        %v647 = vadd.f32 %v645, %v646
        %v648 = vmul.f32 %v535, %v535
        %v649 = vmul.f32 %v540, %v540
        %v650 = vadd.f32 %v648, %v649
        %v651 = vrot.slane %v650, 4
        %v652 = vadd.f32 %v650, %v651
        %v653 = vrot.slane %v652, 2
        %v654 = vadd.f32 %v652, %v653
        %v655 = vrot.slane %v654, 1
        %v656 = vadd.f32 %v654, %v655
        %v657 = vmul.f32 %v617, %v617
        %v658 = vmul.f32 %v623, %v623
        %v659 = vsub.f32 %v657, %v658
        %v660 = vmul.f32 %v659, 0.25
        %v661 = vsub.f32 %v629, %v660
        %v662 = vadd.f32 %v661, %v641
        %v663 = vmul.f32 %v617, %v623
        %v664 = vmul.f32 %v663, 0.5
        %v665 = vsub.f32 %v635, %v664
        %v666 = vadd.f32 %v665, %v647
        %v667 = vmul.f32 %v662, %v662
        %v668 = vmul.f32 %v666, %v666
        %v669 = vadd.f32 %v667, %v668
        %v670 = vmax.f32 %v669, 1.0842022e-19
        %v671 = vrsqrt.pop %v670
        %v672 = vmul.f32 %v670, %v671
        %vm673 = vcmp.eq.f32.partialorder %v670, inf
        %v674 = vsel %vm673, %v670, %v672
        %vm675 = vcmp.eq.f32.partialorder %v670, 0.0
        %v676 = vand.u32 %v670, 2147483648
        %v677 = vsel %vm675, %v676, %v674
        %v678 = vmul.f32 %v677, 4.0
        %v679 = vmax.f32 %v656, 4.7683696e-07
        %v680 = vrcp.pop %v679
        %v681 = vmul.f32 %v678, %v680
        %s682 = sadd.s32 %s24, %s25
        %s683 = smul.u32 %s682, 128
        %s684 = sld [smem:[#allocation3]]
        %s685 = sadd.s32 %s683, 128
        %p686 = scmp.le.s32.totalorder %s685, %s684
        // Predicated region
        $region41: #{tpu_custom_call.1} parent=35 // pred_check
          %p687 = pneg %p686
        $region42: #{tpu_custom_call.1} parent=35 // pred_check_branch
          %689 = sbr.rel (%p687) target = $region44
        $region43: #{tpu_custom_call.1} parent=35 // pred_region
          %v690 = vld [vmem:[%s244] sm:$0x1]
          %v691 = vadd.f32 %v690, %v681
          %692 = vst [vmem:[%s244] sm:$0x1] %v691
        $region44: #{tpu_custom_call.1} parent=35 // pred_fallthru
          _
        %p693 = scmp.gt.s32.totalorder %s685, %s684
        // Predicated region
        $region45: #{tpu_custom_call.1} parent=35 // pred_check
          %p694 = pneg %p693
        $region46: #{tpu_custom_call.1} parent=35 // pred_check_branch
          %696 = sbr.rel (%p694) target = $region48
        $region47: #{tpu_custom_call.1} parent=35 // pred_region
          %v697 = vlaneseq
          %v698 = vand.u32 %v697, 127
          %v699 = vstv %s683
          %v700 = vadd.s32 %v698, %v699
          %v701 = vld [vmem:[%s244] sm:$0x1]
          %v702 = vstv %s684
          %vm703 = vcmp.lt.s32.totalorder %v700, %v702
          %v704 = vsel %vm703, %v681, 0.0
          %v705 = vadd.f32 %v701, %v704
          %706 = vst [vmem:[%s244] sm:$0x1] %v705
        $region48: #{tpu_custom_call.1} parent=35 // pred_fallthru
          _
        %s707 = sand.u32 %s146, 1
        %s708 = scalar_lea.sflag [#allocation5], %s707
        %s709 = sand.u32 %s146, 1
        %s710 = scalar_lea.vmem [#allocation4], %s709
        // Predicated region
        $region49: #{tpu_custom_call.1} parent=35 // pred_check
          %p711 = pneg %p156
        $region50: #{tpu_custom_call.1} parent=35 // pred_check_branch
          %713 = sbr.rel (%p711) target = $region52
        $region51: #{tpu_custom_call.1} parent=35 // pred_region
          %s715 = ssub.s32 16, 16
          %716 = vsyncadd %s708, %s715
          %s717 = smul.addr %s24, 16
          %s718 = scalar_lea.hbm %s5, %s717
          %s720 = sshll.u32 %s710, 4
          %s721 = int_to_ptr.vmem [resolvable:$true] %s720
          %723 = dma.vmem_to_hbm [thread:$0]  %s721, 16, %s718, %s708
        $region52: #{tpu_custom_call.1} parent=35 // pred_fallthru
          _
      $region36: #{tpu_custom_call.1} parent=5 // pred_fallthru
        _
      %p724 = scmp.le.s32.totalorder 2, %s15
      // Predicated region
      $region53: #{tpu_custom_call.1} parent=5 // pred_check
        %p725 = pneg %p724
      $region54: #{tpu_custom_call.1} parent=5 // pred_check_branch
        %727 = sbr.rel (%p725) target = $region56
      $region55: #{tpu_custom_call.1} parent=5 // pred_region
        %s728 = ssub.s32 %s15, 2
        // Predicated region
        $region57: #{tpu_custom_call.1} parent=55 // pred_check
          %p729 = pneg %p162
        $region58: #{tpu_custom_call.1} parent=55 // pred_check_branch
          %731 = sbr.rel (%p729) target = $region60
        $region59: #{tpu_custom_call.1} parent=55 // pred_region
          %s732 = sand.u32 %s147, 1
          %s733 = scalar_lea.sflag [#allocation5], %s732
          %s734 = sand.u32 %s147, 1
          %s735 = scalar_lea.vmem [#allocation4], %s734
          %736 = dma.done %s733, 16
        $region60: #{tpu_custom_call.1} parent=55 // pred_fallthru
          _
      $region56: #{tpu_custom_call.1} parent=5 // pred_fallthru
        _
    $region6: #{tpu_custom_call.1} parent=1 // loop_footer
      %s19 = sadd.s32 1, %s15
    $region7: #{tpu_custom_call.1} parent=1 // loop_footer_branch
      %14 = sbr.rel target = $region3
    $region8: #{tpu_custom_call.1} parent=1 // loop_exit
      _
    %737 = vsyncpa [#allocation5], 1
    %s738 = scalar_lea.sflag [#allocation5], 1
    %739 = vsyncpa %s738, 1

</llo_original>
